<compile_context>
chip_gen: v6e
topology: v6e:2x2x1
jax: 0.10.0
libtpu: 0.0.40
codegen_flags: <defaults>
</compile_context>

<pallas_src>
import functools

import jax
import jax.numpy as jnp
from jax import lax
from jax.experimental import pallas as pl
from jax.experimental.pallas import tpu as pltpu

_LANES = 128
_SUBLANES = 8
_SUB_ROWS = 512        # strip size (rows) for in-block accumulation


def _gan_loss_kernel(x_ref, o_ref, acc_ref, *, target, mse, rows, block_rows,
                     grid_steps, steps_per_chunk, guard_last):
    c = pl.program_id(0)                 # megacore chunk (parallel)
    s = pl.program_id(1)                 # sequential step within the chunk
    blk = c * steps_per_chunk + s        # global block index

    @pl.when(s == 0)
    def _():
        acc_ref[...] = jnp.zeros_like(acc_ref)

    n_full = block_rows // _SUB_ROWS     # static
    rem = block_rows % _SUB_ROWS         # static (multiple of 8 unless rows < 8-aligned)

    def accumulate_strip(row_off, r, masked):
        x = x_ref[pl.ds(row_off, r), :].astype(jnp.float32)
        if mse:
            d = x - jnp.float32(target)
            per = d * d
        elif target == 1.0:
            # nn.BCELoss with all-ones target; PyTorch clamps log at -100.
            per = -jnp.maximum(jnp.log(x), jnp.float32(-100.0))
        else:
            per = -jnp.maximum(jnp.log(1.0 - x), jnp.float32(-100.0))

        if masked:
            # Row-level validity mask (only generated for the last / overshoot
            # block): rows at or past `rows` hold unspecified boundary data.
            row_id = (blk * block_rows + row_off
                      + lax.broadcasted_iota(jnp.int32, (r, 1), 0))
            per = jnp.where(row_id < rows, per, jnp.float32(0.0))

        full8 = (r // _SUBLANES) * _SUBLANES       # static
        if full8:
            acc_ref[...] += per[:full8].reshape(-1, _SUBLANES, _LANES).sum(axis=0)
        tail = r - full8                           # static, 0..7
        if tail:
            # Ragged (<8 rows) remainder (only the small single-block case):
            # collapse once to a scalar and add via a one-hot select so the
            # accumulator update stays a full-vreg op.
            extra = jnp.sum(per[full8:])
            sub_i = lax.broadcasted_iota(jnp.int32, (_SUBLANES, _LANES), 0)
            lane_i = lax.broadcasted_iota(jnp.int32, (_SUBLANES, _LANES), 1)
            onehot = jnp.logical_and(sub_i == 0, lane_i == 0)
            acc_ref[...] += jnp.where(onehot, extra, jnp.float32(0.0))

    def accumulate_block(masked):
        if n_full > 1:
            def body(i, carry):
                off = pl.multiple_of(i * _SUB_ROWS, _SUB_ROWS)
                accumulate_strip(off, _SUB_ROWS, masked)
                return carry
            lax.fori_loop(0, n_full, body, 0, unroll=2)
        elif n_full == 1:
            accumulate_strip(0, _SUB_ROWS, masked)
        if rem:
            accumulate_strip(n_full * _SUB_ROWS, rem, masked)

    if guard_last:
        @pl.when(blk < grid_steps - 1)
        def _():
            accumulate_block(masked=False)

        @pl.when(blk >= grid_steps - 1)   # boundary block and/or overshoot block
        def _():
            accumulate_block(masked=True)
    else:
        accumulate_block(masked=False)

    @pl.when(s == steps_per_chunk - 1)
    def _():
        # Single cross-lane reduce per chunk, into this chunk's SMEM slot.
        o_ref[0, 0] = jnp.sum(acc_ref[...])


def gan_loss(logit, is_real, mse=True, *, tm=8192):
    """Pallas equivalent of GANLoss(mse).forward(logit, is_real).

    `is_real` / `mse` are static Python bools (as in the PyTorch module).
    Returns a float32 scalar (mean reduction, matching nn.MSELoss / nn.BCELoss).
    """
    target = 1.0 if is_real else 0.0
    n = int(logit.size)

    x = logit.reshape(-1)                # free bitcast reshape
    pad = (-n) % _LANES
    if pad:
        # Pad with the NEUTRAL value (== target): contributes exactly 0 to MSE
        # ((t-t)^2) and to BCE (-log(1)=0), so no in-kernel mask is needed for it.
        # TODO(synk): for very large non-128-aligned inputs this jnp.pad still
        # materializes a full HBM copy; a manual-DMA path over the raw 1-D buffer
        # would be needed to avoid it.
        x = jnp.pad(x, (0, pad), constant_values=target)
    rows = (n + pad) // _LANES
    x2 = x.reshape(rows, _LANES)         # free when pad == 0

    block_rows = min(tm, rows)           # tm multiple of 8; else == full dim
    grid_steps = pl.cdiv(rows, block_rows)

    # Split blocks across (up to) two parallel chunks for v7x's 2 TensorCores.
    n_chunks = 2 if grid_steps >= 2 else 1
    steps_per_chunk = pl.cdiv(grid_steps, n_chunks)
    has_overshoot = n_chunks * steps_per_chunk > grid_steps
    guard_last = has_overshoot or (rows % block_rows != 0)

    if has_overshoot:
        # Overshoot step re-reads the last valid block; its contribution is
        # fully masked out in-kernel (compute skipped via the row mask).
        def x_map(c, s):
            return (jnp.minimum(c * steps_per_chunk + s, grid_steps - 1), 0)
    else:
        def x_map(c, s):
            return (c * steps_per_chunk + s, 0)

    kernel = functools.partial(
        _gan_loss_kernel, target=target, mse=mse, rows=rows,
        block_rows=block_rows, grid_steps=grid_steps,
        steps_per_chunk=steps_per_chunk, guard_last=guard_last)

    partials = pl.pallas_call(
        kernel,
        out_shape=jax.ShapeDtypeStruct((n_chunks, 1), jnp.float32),
        grid_spec=pltpu.PrefetchScalarGridSpec(
            num_scalar_prefetch=0,
            grid=(n_chunks, steps_per_chunk),
            in_specs=[pl.BlockSpec((block_rows, _LANES), x_map)],
            out_specs=pl.BlockSpec(
                (1, 1), lambda c, s: (c, 0),
                memory_space=pltpu.MemorySpace.SMEM),
            scratch_shapes=[pltpu.VMEM((_SUBLANES, _LANES), jnp.float32)],
        ),
        compiler_params=pltpu.CompilerParams(
            dimension_semantics=("parallel", "arbitrary"),
            vmem_limit_bytes=32 * 1024 * 1024),
    )(x2)

    return jnp.sum(partials) / jnp.float32(n)


if __name__ == "__main__":
    key = jax.random.PRNGKey(0)

    # Small discriminator-logit-like tensor, NCHW: (B=2, C=4, H=16, W=16).
    raw = jax.random.normal(key, (2, 4, 16, 16), dtype=jnp.float32)
    probs = jax.nn.sigmoid(raw)          # probabilities for the BCE branch

    loss_mse_real = jax.block_until_ready(gan_loss(raw, is_real=True, mse=True))
    loss_mse_fake = jax.block_until_ready(gan_loss(raw, is_real=False, mse=True))
    loss_bce_real = jax.block_until_ready(gan_loss(probs, is_real=True, mse=False))
    loss_bce_fake = jax.block_until_ready(gan_loss(probs, is_real=False, mse=False))

    ref_mse_real = jnp.mean((raw - 1.0) ** 2)
    ref_mse_fake = jnp.mean(raw ** 2)
    ref_bce_real = jnp.mean(-jnp.maximum(jnp.log(probs), -100.0))
    ref_bce_fake = jnp.mean(-jnp.maximum(jnp.log(1.0 - probs), -100.0))

    assert jnp.allclose(loss_mse_real, ref_mse_real, rtol=1e-5, atol=1e-5)
    assert jnp.allclose(loss_mse_fake, ref_mse_fake, rtol=1e-5, atol=1e-5)
    assert jnp.allclose(loss_bce_real, ref_bce_real, rtol=1e-5, atol=1e-5)
    assert jnp.allclose(loss_bce_fake, ref_bce_fake, rtol=1e-5, atol=1e-5)

    # Non-lane-aligned shape (990 elems): exercises the neutral-value pad path.
    raw2 = jax.random.normal(jax.random.PRNGKey(1), (2, 3, 15, 11), dtype=jnp.float32)
    probs2 = jax.nn.sigmoid(raw2)
    l1 = jax.block_until_ready(gan_loss(raw2, is_real=True, mse=True))
    l2 = jax.block_until_ready(gan_loss(probs2, is_real=False, mse=False))
    assert jnp.allclose(l1, jnp.mean((raw2 - 1.0) ** 2), rtol=1e-5, atol=1e-5)
    assert jnp.allclose(l2, jnp.mean(-jnp.maximum(jnp.log(1.0 - probs2), -100.0)),
                        rtol=1e-5, atol=1e-5)

    # Lane-aligned but ragged row count (rows=5): exercises the in-kernel
    # sub-8-row remainder path with NO wrapper-side copy.
    raw4 = jax.random.normal(jax.random.PRNGKey(3), (5, 128), dtype=jnp.float32)
    probs4 = jax.nn.sigmoid(raw4)
    l4a = jax.block_until_ready(gan_loss(raw4, is_real=False, mse=True))
    l4b = jax.block_until_ready(gan_loss(probs4, is_real=True, mse=False))
    assert jnp.allclose(l4a, jnp.mean(raw4 ** 2), rtol=1e-5, atol=1e-5)
    assert jnp.allclose(l4b, jnp.mean(-jnp.maximum(jnp.log(probs4), -100.0)),
                        rtol=1e-5, atol=1e-5)

    # Larger shape (rows=1024): default tm -> single big block with strip-mined
    # fori_loop; small tm values force the multi-block, 2-chunk, boundary-mask
    # and overshoot paths at small size.
    raw3 = jax.random.normal(jax.random.PRNGKey(2), (4, 8, 64, 64), dtype=jnp.float32)
    ref3 = jnp.mean(raw3 ** 2)
    l3a = jax.block_until_ready(gan_loss(raw3, is_real=False, mse=True))            # 1 block
    l3b = jax.block_until_ready(gan_loss(raw3, is_real=False, mse=True, tm=256))    # even split
    l3c = jax.block_until_ready(gan_loss(raw3, is_real=False, mse=True, tm=384))    # odd split + overshoot + tail mask
    assert jnp.allclose(l3a, ref3, rtol=1e-5, atol=1e-5)
    assert jnp.allclose(l3b, ref3, rtol=1e-5, atol=1e-5)
    assert jnp.allclose(l3c, ref3, rtol=1e-5, atol=1e-5)

    print("KERNEL_OK")
</pallas_src>

<mosaic_0001>
module attributes {stable_mosaic.version = 11 : i64} {
  func.func @_gan_loss_kernel(%arg0: i32, %arg1: i32, %arg2: memref<16x128xf32, #tpu.memory_space<vmem>>, %arg3: memref<1x1xf32, #tpu.memory_space<smem>>, %arg4: memref<8x128xf32, #tpu.memory_space<vmem>>) attributes {dimension_semantics = [#tpu.dimension_semantics<parallel>, #tpu.dimension_semantics<arbitrary>], iteration_bounds = array<i64: 1, 1>, scalar_prefetch = 0 : i64, scratch_operands = 1 : i64, tpu.core_type = #tpu.core_type<tc>, window_params = [{transform_indices = @transform_0, window_bounds = array<i64: 16, 128>}, {transform_indices = @transform_1, window_bounds = array<i64: 1, 1>}]} {
    %c0_i32 = arith.constant 0 : i32
    %0 = arith.cmpi eq, %arg1, %c0_i32 : i32
    %1 = arith.extui %0 : i1 to i32
    %c0_i32_0 = arith.constant 0 : i32
    %2 = arith.cmpi ne, %1, %c0_i32_0 : i32
    scf.if %2 {
      %cst_9 = arith.constant 0.000000e+00 : f32
      %15 = vector.broadcast %cst_9 : f32 to vector<8x128xf32>
      %c0_10 = arith.constant 0 : index
      %c0_11 = arith.constant 0 : index
      %16 = vector.load %arg4[%c0_10, %c0_11] : memref<8x128xf32, #tpu.memory_space<vmem>>, vector<8x128xf32>
      tpu.vector_store %arg4[%c0_10, %c0_11], %15 {strides = array<i32>} : memref<8x128xf32, #tpu.memory_space<vmem>>, vector<8x128xf32>,
    } else {
    }
    %c0 = arith.constant 0 : index
    %c0_1 = arith.constant 0 : index
    %3 = vector.load %arg2[%c0, %c0_1] : memref<16x128xf32, #tpu.memory_space<vmem>>, vector<16x128xf32>
    %cst = arith.constant 1.000000e+00 : f32
    %4 = vector.broadcast %cst : f32 to vector<16x128xf32>
    %5 = arith.subf %3, %4 : vector<16x128xf32>
    %6 = arith.mulf %5, %5 : vector<16x128xf32>
    %c0_2 = arith.constant 0 : index
    %c0_3 = arith.constant 0 : index
    %7 = vector.load %arg4[%c0_2, %c0_3] : memref<8x128xf32, #tpu.memory_space<vmem>>, vector<8x128xf32>
    %8 = vector.shape_cast %6 : vector<16x128xf32> to vector<2x8x128xf32>
    %cst_4 = arith.constant dense<0.000000e+00> : vector<8x128xf32>
    %9 = vector.multi_reduction <add>, %8, %cst_4 [0] : vector<2x8x128xf32> to vector<8x128xf32>
    %10 = arith.addf %7, %9 : vector<8x128xf32>
    %c0_5 = arith.constant 0 : index
    %c0_6 = arith.constant 0 : index
    %11 = vector.load %arg4[%c0_5, %c0_6] : memref<8x128xf32, #tpu.memory_space<vmem>>, vector<8x128xf32>
    tpu.vector_store %arg4[%c0_5, %c0_6], %10 {strides = array<i32>} : memref<8x128xf32, #tpu.memory_space<vmem>>, vector<8x128xf32>,
    %c0_i32_7 = arith.constant 0 : i32
    %12 = arith.cmpi eq, %arg1, %c0_i32_7 : i32
    %13 = arith.extui %12 : i1 to i32
    %c0_i32_8 = arith.constant 0 : i32
    %14 = arith.cmpi ne, %13, %c0_i32_8 : i32
    scf.if %14 {
      %c0_9 = arith.constant 0 : index
      %c0_10 = arith.constant 0 : index
      %15 = vector.load %arg4[%c0_9, %c0_10] : memref<8x128xf32, #tpu.memory_space<vmem>>, vector<8x128xf32>
      %16 = vector.shape_cast %15 : vector<8x128xf32> to vector<1x8x128xf32>
      %cst_11 = arith.constant dense<0.000000e+00> : vector<1xf32>
      %17 = vector.multi_reduction <add>, %16, %cst_11 [1, 2] : vector<1x8x128xf32> to vector<1xf32>
      %18 = vector.shape_cast %17 : vector<1xf32> to vector<1x1x1xf32>
      %19 = vector.extract %18[0, 0, 0] : f32 from vector<1x1x1xf32>
      %c0_12 = arith.constant 0 : index
      %c0_13 = arith.constant 0 : index
      %20 = memref.load %arg3[%c0_12, %c0_13] : memref<1x1xf32, #tpu.memory_space<smem>>
      memref.store %19, %arg3[%c0_12, %c0_13] : memref<1x1xf32, #tpu.memory_space<smem>>
    } else {
    }
    return
  }
  func.func @transform_0(%arg0: i32, %arg1: i32) -> (i32, i32) {
    %c1_i32 = arith.constant 1 : i32
    %0 = arith.muli %arg0, %c1_i32 : i32
    %1 = arith.addi %0, %arg1 : i32
    %c0_i32 = arith.constant 0 : i32
    %c0_i32_0 = arith.constant 0 : i32
    return %1, %c0_i32 : i32, i32
  }
  func.func @transform_1(%arg0: i32, %arg1: i32) -> (i32, i32) {
    %c0_i32 = arith.constant 0 : i32
    %c0_i32_0 = arith.constant 0 : i32
    return %arg0, %c0_i32 : i32, i32
  }
}

</mosaic_0001>

<llo_original>
// kernel: tpu_custom_call.1
$region0: #{tpu_custom_call.1}
  #allocation0 [shape = 'u32[]', space=smem, size = 0x4, offset = 0x4, fixed_abs, tag = 'smem constant byte address 0x4 - core index']
  #allocation1 [shape = 'u32[144,128]{1,0:T(1,128)}', space=vmem, size = 0x12000, scoped, tag = 'internal scratch']
  #allocation2 [shape = 'f32[8,128]{1,0:T(8,128)}', space=vmem, size = 0x1000, scoped, tag = 'scratch operand']
  %s0 = inlined_call_operand.hbm [shape: f32[16,128], index: 0, kind: input, shape index: {}]
  %s1 = inlined_call_operand.hbm [shape: f32[1,1], index: 1, kind: output, shape index: {}]
  %s2 = sld [smem:[#allocation0]]
  $region26: #{tpu_custom_call.1} parent=0
    _
  %s4 = ssub.s32 1, %s2
  %s5 = scalar_select 0, %s4, %s2
  $region1: #{tpu_custom_call.1} parent=0
    #allocation3 [shape = 'u8[8192]{0}', space=vmem, size = 0x2000, scoped, tag = 'input window, operand 0, single buffered']
    #allocation4 [shape = 's32[1]{0}', space=sflag, size = 0x4, scoped, tag = 'scoped memory for tpu_custom_call.1']
    #allocation5 [shape = 's32[1]{0}', space=sflag, size = 0x4, scoped, tag = 'scoped memory for tpu_custom_call.1']
    #allocation6 [shape = 'u8[512]{0}', space=smem, size = 0x200, scoped, tag = 'output window, operand 0, single buffered']
    %6 = vsyncpa [#allocation4], 0
    %7 = vsyncpa [#allocation5], 0
    // Predicated region
    $region2: #{tpu_custom_call.1} parent=1 // pred_check
      _
    $region3: #{tpu_custom_call.1} parent=1 // pred_check_branch
      %9 = sbr.rel (0) target = $region5
    $region4: #{tpu_custom_call.1} parent=1 // pred_region
      %s10 = sadd.s32 0, 0
      %s11 = smul.u32 2, %s10
      %s13 = ssub.s32 256, 256
      %14 = vsyncadd [#allocation4], %s13
      %s15 = smul.addr %s11, 128
      %s16 = scalar_lea.hbm %s0, %s15
      %s17 = sshll.u32 [#allocation3], 4
      %s18 = int_to_ptr.vmem [resolvable:$true] %s17
      %23 = dma.hbm_to_vmem [thread:$0]  %s16, 256, %s18, [#allocation4], 128, 128, 8
    $region5: #{tpu_custom_call.1} parent=1 // pred_fallthru
      _
    // Predicated region
    $region6: #{tpu_custom_call.1} parent=1 // pred_check
      _
    $region7: #{tpu_custom_call.1} parent=1 // pred_check_branch
      %25 = sbr.rel (0) target = $region9
    $region8: #{tpu_custom_call.1} parent=1 // pred_region
      %26 = dma.done [#allocation4], 256
    $region9: #{tpu_custom_call.1} parent=1 // pred_fallthru
      _
    %s27 = sadd.s32 0, 0
    %s28 = smul.u32 2, %s27
    %p29 = scmp.eq.s32.totalorder 0, 0
    // Predicated region
    $region10: #{tpu_custom_call.1} parent=1 // pred_check
      %p30 = pneg %p29
    $region11: #{tpu_custom_call.1} parent=1 // pred_check_branch
      %32 = sbr.rel (%p30) target = $region13
    $region12: #{tpu_custom_call.1} parent=1 // pred_region
      %33 = vst [vmem:[#allocation2] sm:$0xff] 0.0
    $region13: #{tpu_custom_call.1} parent=1 // pred_fallthru
      _
    %v34 = vld [vmem:[#allocation3] sm:$0xff]
    %v35 = vld [vmem:[#allocation3 + $0x8] sm:$0xff]
    %v36 = vsub.f32 %v34, 1.0
    %v37 = vsub.f32 %v35, 1.0
    %v38 = vmul.f32 %v36, %v36
    %v39 = vmul.f32 %v37, %v37
    %v40 = vld [vmem:[#allocation2] sm:$0xff]
    %v41 = vadd.f32 %v38, %v39
    %v42 = vadd.f32 %v40, %v41
    %43 = vst [vmem:[#allocation2] sm:$0xff] %v42
    // Predicated region
    $region14: #{tpu_custom_call.1} parent=1 // pred_check
      %p44 = pneg %p29
    $region15: #{tpu_custom_call.1} parent=1 // pred_check_branch
      %46 = sbr.rel (%p44) target = $region17
    $region16: #{tpu_custom_call.1} parent=1 // pred_region
      %v47 = vld [vmem:[#allocation2] sm:$0xff]
      %48 = vadd.xlane.f32.xlu0 %v47
      %v49 = vpop.xlane.xlu0 %48
      %v50 = vrot.slane %v49, 4
      %v51 = vadd.f32 %v49, %v50
      %v52 = vrot.slane %v51, 2
      %v53 = vadd.f32 %v51, %v52
      %v54 = vrot.slane %v53, 1
      %v55 = vadd.f32 %v53, %v54
      %s56 = vtos %v55
      %s57 = scalar_lea.smem [#allocation6], 0
      %58 = sst [smem:[%s57]] %s56
    $region17: #{tpu_custom_call.1} parent=1 // pred_fallthru
      _
    // Predicated region
    $region18: #{tpu_custom_call.1} parent=1 // pred_check
      _
    $region19: #{tpu_custom_call.1} parent=1 // pred_check_branch
      %60 = sbr.rel (0) target = $region21
    $region20: #{tpu_custom_call.1} parent=1 // pred_region
      %s62 = ssub.s32 16, 16
      %63 = vsyncadd [#allocation5], %s62
      %66 = dma.smem_to_hbm [#allocation6], 16, %s1, [#allocation5]
    $region21: #{tpu_custom_call.1} parent=1 // pred_fallthru
      _
    // Predicated region
    $region22: #{tpu_custom_call.1} parent=1 // pred_check
      _
    $region23: #{tpu_custom_call.1} parent=1 // pred_check_branch
      %68 = sbr.rel (0) target = $region25
    $region24: #{tpu_custom_call.1} parent=1 // pred_region
      %69 = dma.done [#allocation5], 16
    $region25: #{tpu_custom_call.1} parent=1 // pred_fallthru
      _
    %70 = sfence
    %71 = vsyncpa [#allocation4], 1
    %72 = vsyncpa [#allocation5], 1

</llo_original>
